<compile_context>
chip_gen: v7x
topology: tpu7x:2x2x1
jax: 0.10.0
libtpu: 0.0.40
codegen_flags: <defaults>
</compile_context>

<pallas_src>
import jax
import jax.numpy as jnp
from jax.experimental import pallas as pl
from jax.experimental.pallas import tpu as pltpu

# Layer sizes of the reference nn.Sequential
DIMS = [768, 1024, 128, 64, 16, 1]


def _collapse_params(params):
    """Fold the activation-free Linear chain into one affine map (exact algebra)."""
    w_eff, b_eff = params[0]                      # [768, 1024], [1, 1024]
    for (w, b) in params[1:]:
        b_eff = b_eff @ w + b
        w_eff = w_eff @ w
    return w_eff, b_eff                           # [768, 1], [1, 1]


def mlp_kernel(x_ref, w_ref, b_ref, o_ref):
    # x_ref: [tb, 768] f32, w_ref: [1, 768] f32 (broadcast over sublanes),
    # b_ref: [1, 1] f32.  VPU multiply + cross-lane reduce (XLU slot); no MXU —
    # an N=1 matmul would occupy <1% of the MXU output lanes for zero gain
    # (the kernel is HBM-bound on streaming x, not compute-bound).
    x = x_ref[...]
    w = w_ref[...]
    acc = jnp.sum(x * w, axis=-1, keepdims=True)          # [tb, 1] f32
    o_ref[...] = (acc + b_ref[...]).astype(o_ref.dtype)


def mlp_forward(embed, params, *, block_b=512):
    """embed: [B, 768] f32.  params: list of (W [in,out], b [1,out])."""
    B, D_in = embed.shape
    assert D_in == DIMS[0]

    # Host-side (traced-once) algebraic collapse of the layer chain.
    w_eff, b_eff = _collapse_params(params)               # [768, 1], [1, 1]
    w_row = w_eff.T                                       # [1, 768] lane-aligned

    # Batch tiling: pad to a sublane-aligned multiple of the tile (no asserts).
    b_pad8 = ((B + 7) // 8) * 8
    tb = min(block_b, b_pad8)
    tb = max(8, (tb // 8) * 8)                            # sublane-aligned tile
    b_pad = ((b_pad8 + tb - 1) // tb) * tb
    if b_pad != B:
        embed = jnp.pad(embed, ((0, b_pad - B), (0, 0)))

    grid = (b_pad // tb,)

    cost = pl.CostEstimate(
        flops=2 * b_pad * DIMS[0],
        transcendentals=0,
        bytes_accessed=b_pad * DIMS[0] * 4 + DIMS[0] * 4 + b_pad * 4,
    )

    out = pl.pallas_call(
        mlp_kernel,
        out_shape=jax.ShapeDtypeStruct((b_pad, DIMS[-1]), embed.dtype),
        grid_spec=pltpu.PrefetchScalarGridSpec(
            num_scalar_prefetch=0,
            grid=grid,
            in_specs=[
                pl.BlockSpec((tb, DIMS[0]), lambda i: (i, 0)),   # x tile (streamed)
                pl.BlockSpec((1, DIMS[0]), lambda i: (0, 0)),    # W_eff^T (resident)
                pl.BlockSpec((1, 1), lambda i: (0, 0)),          # b_eff (resident)
            ],
            out_specs=pl.BlockSpec((tb, DIMS[-1]), lambda i: (i, 0)),
        ),
        compiler_params=pltpu.CompilerParams(
            dimension_semantics=("parallel",),
        ),
        cost_estimate=cost,
    )(embed, w_row, b_eff)

    return out[:B]


def init_params(key):
    """Deterministic init mimicking nn.Linear defaults (U(-1/sqrt(fan_in), +))."""
    params = []
    for i in range(len(DIMS) - 1):
        fan_in, fan_out = DIMS[i], DIMS[i + 1]
        key, kw, kb = jax.random.split(key, 3)
        bound = 1.0 / (fan_in ** 0.5)
        w = jax.random.uniform(kw, (fan_in, fan_out), jnp.float32, -bound, bound)
        b = jax.random.uniform(kb, (1, fan_out), jnp.float32, -bound, bound)
        params.append((w, b))
    return params


def mlp_reference(embed, params):
    """Layer-by-layer reference (dropout = identity at inference)."""
    h = embed
    for (w, b) in params:
        h = h @ w + b
    return h


if __name__ == "__main__":
    key = jax.random.PRNGKey(0)
    key, kx = jax.random.split(key)

    B = 16  # small batch; padded/tiled to sublane-aligned blocks internally
    embed = jax.random.normal(kx, (B, DIMS[0]), jnp.float32)
    params = init_params(key)

    out = mlp_forward(embed, params)
    out = jax.block_until_ready(out)

    ref = mlp_reference(embed, params)
    assert out.shape == (B, 1), out.shape
    # Collapsed chain reassociates the f32 matmuls; tolerance covers that.
    assert jnp.allclose(out, ref, atol=1e-3, rtol=1e-3), (
        float(jnp.max(jnp.abs(out - ref))))

    print("KERNEL_OK")
</pallas_src>

<mosaic_0001>
module attributes {stable_mosaic.version = 11 : i64} {
  func.func @mlp_kernel(%arg0: i32, %arg1: memref<16x768xf32, #tpu.memory_space<vmem>>, %arg2: memref<1x768xf32, #tpu.memory_space<vmem>>, %arg3: memref<1x1xf32, #tpu.memory_space<vmem>>, %arg4: memref<16x1xf32, #tpu.memory_space<vmem>>) attributes {dimension_semantics = [#tpu.dimension_semantics<parallel>], iteration_bounds = array<i64: 1>, scalar_prefetch = 0 : i64, scratch_operands = 0 : i64, tpu.core_type = #tpu.core_type<tc>, window_params = [{transform_indices = @transform_0, window_bounds = array<i64: 16, 768>}, {pipeline_mode = #tpu.pipeline_mode<synchronous>, transform_indices = @transform_1, window_bounds = array<i64: 1, 768>}, {pipeline_mode = #tpu.pipeline_mode<synchronous>, transform_indices = @transform_2, window_bounds = array<i64: 1, 1>}, {transform_indices = @transform_3, window_bounds = array<i64: 16, 1>}]} {
    %c0 = arith.constant 0 : index
    %c0_0 = arith.constant 0 : index
    %0 = vector.load %arg1[%c0, %c0_0] : memref<16x768xf32, #tpu.memory_space<vmem>>, vector<16x768xf32>
    %c0_1 = arith.constant 0 : index
    %c0_2 = arith.constant 0 : index
    %1 = vector.load %arg2[%c0_1, %c0_2] : memref<1x768xf32, #tpu.memory_space<vmem>>, vector<1x768xf32>
    %2 = vector.broadcast %1 : vector<1x768xf32> to vector<16x768xf32>
    %3 = arith.mulf %0, %2 : vector<16x768xf32>
    %cst = arith.constant dense<0.000000e+00> : vector<16xf32>
    %4 = vector.multi_reduction <add>, %3, %cst [1] : vector<16x768xf32> to vector<16xf32>
    %5 = vector.shape_cast %4 : vector<16xf32> to vector<16x1xf32>
    %c0_3 = arith.constant 0 : index
    %c0_4 = arith.constant 0 : index
    %6 = vector.load %arg3[%c0_3, %c0_4] : memref<1x1xf32, #tpu.memory_space<vmem>>, vector<1x1xf32>
    %7 = vector.broadcast %6 : vector<1x1xf32> to vector<16x1xf32>
    %8 = arith.addf %5, %7 : vector<16x1xf32>
    %c0_5 = arith.constant 0 : index
    %c0_6 = arith.constant 0 : index
    %9 = vector.load %arg4[%c0_5, %c0_6] : memref<16x1xf32, #tpu.memory_space<vmem>>, vector<16x1xf32>
    tpu.vector_store %arg4[%c0_5, %c0_6], %8 {strides = array<i32>} : memref<16x1xf32, #tpu.memory_space<vmem>>, vector<16x1xf32>,
    return
  }
  func.func @transform_0(%arg0: i32) -> (i32, i32) {
    %c0_i32 = arith.constant 0 : i32
    %c0_i32_0 = arith.constant 0 : i32
    return %arg0, %c0_i32 : i32, i32
  }
  func.func @transform_1(%arg0: i32) -> (i32, i32) {
    %c0_i32 = arith.constant 0 : i32
    %c0_i32_0 = arith.constant 0 : i32
    %c0_i32_1 = arith.constant 0 : i32
    return %c0_i32, %c0_i32_0 : i32, i32
  }
  func.func @transform_2(%arg0: i32) -> (i32, i32) {
    %c0_i32 = arith.constant 0 : i32
    %c0_i32_0 = arith.constant 0 : i32
    %c0_i32_1 = arith.constant 0 : i32
    return %c0_i32, %c0_i32_0 : i32, i32
  }
  func.func @transform_3(%arg0: i32) -> (i32, i32) {
    %c0_i32 = arith.constant 0 : i32
    %c0_i32_0 = arith.constant 0 : i32
    return %arg0, %c0_i32 : i32, i32
  }
}

</mosaic_0001>

<llo_original>
// kernel: tpu_custom_call.1
$region0: #{tpu_custom_call.1}
  #allocation0 [shape = 'u32[]', space=smem, size = 0x4, offset = 0x4, fixed_abs, tag = 'smem constant byte address 0x4 - core index']
  #allocation1 [shape = 'u32[144,128]{1,0:T(1,128)}', space=vmem, size = 0x12000, scoped, tag = 'internal scratch']
  #allocation2 [shape = 'f32[1,1]{1,0:T(1,128)S(1)}', space=vmem, size = 0x200, scoped, tag = 'scoped memory for tpu_custom_call.1']
  %s0 = inlined_call_operand.hbm [shape: f32[16,768], index: 0, kind: input, shape index: {}]
  %s1 = inlined_call_operand.vmem [shape: f32[1,768], index: 1, kind: input, shape index: {}]
  %s2 = inlined_call_operand.<no memory space> [shape: f32[1,1], index: 2, kind: input, shape index: {}]
  %s3 = inlined_call_operand.vmem [shape: f32[16,1], index: 3, kind: output, shape index: {}]
  %s4 = sld [smem:[#allocation0]]
  $region26: #{tpu_custom_call.1} parent=0
    _
  %s6 = ssub.s32 1, %s4
  %s7 = scalar_select 0, %s6, %s4
  %v8 = vstv %s2
  %9 = vst [vmem:[#allocation2] sm:$0x1] %v8
  $region1: #{tpu_custom_call.1} parent=0
    #allocation3 [shape = 'u8[49152]{0}', space=vmem, size = 0xc000, scoped, tag = 'input window, operand 0, single buffered']
    #allocation4 [shape = 's32[1]{0}', space=sflag, size = 0x4, scoped, tag = 'scoped memory for tpu_custom_call.1']
    %10 = vsyncpa [#allocation4], 0
    // Predicated region
    $region2: #{tpu_custom_call.1} parent=1 // pred_check
      _
    $region3: #{tpu_custom_call.1} parent=1 // pred_check_branch
      %12 = sbr.rel (0) target = $region5
    $region4: #{tpu_custom_call.1} parent=1 // pred_region
      %s14 = ssub.s32 1536, 1536
      %15 = vsyncadd [#allocation4], %s14
      %s16 = sshll.u32 [#allocation3], 4
      %s17 = int_to_ptr.vmem [resolvable:$true] %s16
      %22 = dma.hbm_to_vmem [thread:$0]  %s0, 1536, %s17, [#allocation4], 768, 768, 48
    $region5: #{tpu_custom_call.1} parent=1 // pred_fallthru
      _
    // Predicated region
    $region6: #{tpu_custom_call.1} parent=1 // pred_check
      _
    $region7: #{tpu_custom_call.1} parent=1 // pred_check_branch
      %24 = sbr.rel (0) target = $region9
    $region8: #{tpu_custom_call.1} parent=1 // pred_region
      _
    $region9: #{tpu_custom_call.1} parent=1 // pred_fallthru
      _
    // Predicated region
    $region10: #{tpu_custom_call.1} parent=1 // pred_check
      _
    $region11: #{tpu_custom_call.1} parent=1 // pred_check_branch
      %26 = sbr.rel (0) target = $region13
    $region12: #{tpu_custom_call.1} parent=1 // pred_region
      _
    $region13: #{tpu_custom_call.1} parent=1 // pred_fallthru
      _
    // Predicated region
    $region14: #{tpu_custom_call.1} parent=1 // pred_check
      _
    $region15: #{tpu_custom_call.1} parent=1 // pred_check_branch
      %28 = sbr.rel (0) target = $region17
    $region16: #{tpu_custom_call.1} parent=1 // pred_region
      %29 = dma.done [#allocation4], 1536
    $region17: #{tpu_custom_call.1} parent=1 // pred_fallthru
      _
    %v30 = vld [vmem:[#allocation3] sm:$0xff]
    %v31 = vld [vmem:[#allocation3 + $0x8] sm:$0xff]
    %v32 = vld [vmem:[#allocation3 + $0x10] sm:$0xff]
    %v33 = vld [vmem:[#allocation3 + $0x18] sm:$0xff]
    %v34 = vld [vmem:[#allocation3 + $0x20] sm:$0xff]
    %v35 = vld [vmem:[#allocation3 + $0x28] sm:$0xff]
    %v36 = vld [vmem:[#allocation3 + $0x30] sm:$0xff]
    %v37 = vld [vmem:[#allocation3 + $0x38] sm:$0xff]
    %v38 = vld [vmem:[#allocation3 + $0x40] sm:$0xff]
    %v39 = vld [vmem:[#allocation3 + $0x48] sm:$0xff]
    %v40 = vld [vmem:[#allocation3 + $0x50] sm:$0xff]
    %v41 = vld [vmem:[#allocation3 + $0x58] sm:$0xff]
    %v42 = vld [vmem:[%s1] sm:$0x3f]
    %v44 = vlaneseq
    %v45 = vshrl.u32 %v44, 7
    %v46 = vsub.s32 0, %v45
    %v47 = vrot.slane %v42, %v46
    %v48 = vlaneseq
    %v49 = vshrl.u32 %v48, 7
    %v50 = vsub.s32 1, %v49
    %v51 = vrot.slane %v42, %v50
    %v52 = vlaneseq
    %v53 = vshrl.u32 %v52, 7
    %v54 = vsub.s32 2, %v53
    %v55 = vrot.slane %v42, %v54
    %v56 = vlaneseq
    %v57 = vshrl.u32 %v56, 7
    %v58 = vsub.s32 3, %v57
    %v59 = vrot.slane %v42, %v58
    %v60 = vlaneseq
    %v61 = vshrl.u32 %v60, 7
    %v62 = vsub.s32 4, %v61
    %v63 = vrot.slane %v42, %v62
    %v64 = vlaneseq
    %v65 = vshrl.u32 %v64, 7
    %v66 = vsub.s32 5, %v65
    %v67 = vrot.slane %v42, %v66
    %v74 = vmul.f32 %v30, %v47
    %v75 = vmul.f32 %v31, %v51
    %v76 = vmul.f32 %v32, %v55
    %v77 = vmul.f32 %v33, %v59
    %v78 = vmul.f32 %v34, %v63
    %v79 = vmul.f32 %v35, %v67
    %v80 = vmul.f32 %v36, %v47
    %v81 = vmul.f32 %v37, %v51
    %v82 = vmul.f32 %v38, %v55
    %v83 = vmul.f32 %v39, %v59
    %v84 = vmul.f32 %v40, %v63
    %v85 = vmul.f32 %v41, %v67
    %v86 = vadd.f32 %v74, %v75
    %v87 = vadd.f32 %v86, %v76
    %v88 = vadd.f32 %v87, %v77
    %v89 = vadd.f32 %v88, %v78
    %v90 = vadd.f32 %v89, %v79
    %91 = vadd.xlane.f32.xlu0 %v90
    %v92 = vpop.xlane.xlu0 %91
    %v93 = vadd.f32 %v80, %v81
    %v94 = vadd.f32 %v93, %v82
    %v95 = vadd.f32 %v94, %v83
    %v96 = vadd.f32 %v95, %v84
    %v97 = vadd.f32 %v96, %v85
    %98 = vadd.xlane.f32.xlu0 %v97
    %v99 = vpop.xlane.xlu0 %98
    %v100 = vld [vmem:[#allocation2] sm:$0x1]
    %v102 = vlaneseq
    %v103 = vshrl.u32 %v102, 7
    %v104 = vsub.s32 0, %v103
    %v105 = vrot.slane %v100, %v104
    %v107 = vadd.f32 %v92, %v105
    %v108 = vadd.f32 %v99, %v105
    %vm109 = vcmask 7168
    %110 = vst.msk [vmem:[%s3] sm:$0xff] %vm109, %v107
    %111 = vst.msk [vmem:[%s3 + $0x8] sm:$0xff] %vm109, %v108
    // Predicated region
    $region18: #{tpu_custom_call.1} parent=1 // pred_check
      _
    $region19: #{tpu_custom_call.1} parent=1 // pred_check_branch
      %113 = sbr.rel (0) target = $region21
    $region20: #{tpu_custom_call.1} parent=1 // pred_region
      _
    $region21: #{tpu_custom_call.1} parent=1 // pred_fallthru
      _
    // Predicated region
    $region22: #{tpu_custom_call.1} parent=1 // pred_check
      _
    $region23: #{tpu_custom_call.1} parent=1 // pred_check_branch
      %115 = sbr.rel (0) target = $region25
    $region24: #{tpu_custom_call.1} parent=1 // pred_region
      _
    $region25: #{tpu_custom_call.1} parent=1 // pred_fallthru
      _
    %116 = vsyncpa [#allocation4], 1

</llo_original>
